<compile_context>
chip_gen: v7x
topology: tpu7x:2x2x1
jax: 0.10.0
libtpu: 0.0.40
codegen_flags: <defaults>
</compile_context>

<pallas_src>
import jax
import jax.numpy as jnp
from jax.experimental import pallas as pl
from jax.experimental.pallas import tpu as pltpu


def _round_up(x, m):
    return (x + m - 1) // m * m


def classifier_attention_kernel(
    nvalid_ref,              # SMEM (1,) int32 : true batch size (masks padded tail rows)
    x_ref,                   # (tile_n, D_in)  input tile
    w1_ref,                  # (D_in, H)       fc1 weight, stored (in, out)
    wa_ref,                  # (H, A)          attention_layer weight, (in, out)
    w2_ref,                  # (H, H)          fc2 weight, (in, out)
    rows_ref,                # (1, PACK)       packed: b1 | ba | bs | b2 | b3 | ws | w3
    out_ref,                 # (tile_n, 2)     [:, 0] = fc3 output, [:, 1] = raw attn weights
    m_sc,                    # VMEM (1, 2)     running column max  (softmax reduction)
    s_sc,                    # VMEM (1, 2)     running column sum  (softmax reduction)
):
    p = pl.program_id(0)     # 0 = reduction pass, 1 = output pass
    i = pl.program_id(1)     # batch-tile index
    tile_n = x_ref.shape[0]
    h_dim = w1_ref.shape[1]
    a_dim = wa_ref.shape[1]

    # Unpack the single row-parameter operand (static lane slices).
    rows = rows_ref[...]
    o = 0
    b1 = rows[:, o:o + h_dim]; o += h_dim          # (1, H)   fc1 bias
    ba = rows[:, o:o + a_dim]; o += a_dim          # (1, A)   attention_layer bias
    bs = rows[:, o:o + 1];     o += 1              # (1, 1)   attention_score bias
    b2 = rows[:, o:o + h_dim]; o += h_dim          # (1, H)   fc2 bias
    b3 = rows[:, o:o + 1];     o += 1              # (1, 1)   fc3 bias
    ws = rows[:, o:o + a_dim]; o += a_dim          # (1, A)   attention_score weight row
    w3 = rows[:, o:o + h_dim]; o += h_dim          # (1, H)   fc3 weight row

    def fc1_and_logits():
        # x = d1(tanh(fc1(x)))  -- dropout is identity in eval mode.
        # TODO(synk): nn.Dropout(0.5) training-mode masking not implemented (eval semantics).
        x = x_ref[...]
        h = jnp.tanh(
            jnp.dot(x, w1_ref[...], preferred_element_type=jnp.float32) + b1
        )                                                             # (tile_n, H)
        a_pre = (
            jnp.dot(h, wa_ref[...], preferred_element_type=jnp.float32) + ba
        )                                                             # (tile_n, A)
        # attention_score (A -> 1): VPU broadcast-multiply + XLU lane reduce
        # instead of a 1-lane-wide MXU matmul (127/128 lanes wasted + MRF drain).
        attn_logits = jnp.sum(jnp.tanh(a_pre) * ws, axis=-1, keepdims=True) + bs
        raw_logits = jnp.sum(jnp.maximum(a_pre, 0.0) * ws, axis=-1, keepdims=True) + bs
        # Both dim-0 softmaxes merged into one (tile_n, 2) problem.
        return h, jnp.concatenate([attn_logits, raw_logits], axis=-1)

    # ---------- pass 0: online dim-0 softmax reduction across all tiles ----------
    @pl.when(p == 0)
    def _():
        @pl.when(i == 0)
        def _():
            m_sc[...] = jnp.full(m_sc.shape, -1e30, jnp.float32)
            s_sc[...] = jnp.zeros(s_sc.shape, jnp.float32)

        _, logits2 = fc1_and_logits()
        # Mask padded rows (only present in the last tile).
        row_ids = i * tile_n + jax.lax.broadcasted_iota(jnp.int32, (tile_n, 1), 0)
        logits2 = jnp.where(row_ids < nvalid_ref[0], logits2, -1e30)

        m_old = m_sc[...]
        m_new = jnp.maximum(m_old, jnp.max(logits2, axis=0, keepdims=True))
        s_sc[...] = (s_sc[...] * jnp.exp(m_old - m_new)
                     + jnp.sum(jnp.exp(logits2 - m_new), axis=0, keepdims=True))
        m_sc[...] = m_new

    # ---------- pass 1: apply global normalizer, fc2 / fc3, packed store ----------
    @pl.when(p == 1)
    def _():
        h, logits2 = fc1_and_logits()
        s = s_sc[...]
        # EUP approximate reciprocal (free slot) + one Newton step -> full f32 accuracy.
        r = pl.reciprocal(s, approx=True)
        r = r * (2.0 - s * r)
        sm = jnp.exp(logits2 - m_sc[...]) * r        # (tile_n, 2) both softmaxes

        # x = x * attention_weights ; x = d2(tanh(fc2(x)))  (dropout = identity)
        h_att = h * sm[:, 0:1]
        h2 = jnp.tanh(
            jnp.dot(h_att, w2_ref[...], preferred_element_type=jnp.float32) + b2
        )                                            # (tile_n, H)
        # fc3 (H -> 1): VPU multiply + lane reduce (no 1-lane MXU matmul).
        out_col = jnp.sum(h2 * w3, axis=-1, keepdims=True) + b3
        # Pack fc3 output + raw attention weights into one lane-packed store.
        out_ref[...] = jnp.concatenate([out_col, sm[:, 1:2]], axis=-1)


def classifier_with_attention(x, params, *, tile_n=None):
    n, d_in = x.shape
    h_dim = params["w1"].shape[1]
    a_dim = params["wa"].shape[1]

    if tile_n is None:
        tile_n = min(1024, _round_up(n, 8))
    n_pad = _round_up(n, tile_n)
    if n_pad != n:
        x = jnp.pad(x, ((0, n_pad - n), (0, 0)))
    nt = n_pad // tile_n

    # Pack every row-shaped parameter into one lane-padded (1, PACK) operand.
    rows = jnp.concatenate(
        [params["b1"], params["ba"], params["bs"], params["b2"], params["b3"],
         params["ws"], params["w3"]], axis=-1)
    pack = _round_up(rows.shape[-1], 128)
    rows = jnp.pad(rows, ((0, 0), (0, pack - rows.shape[-1])))

    nvalid = jnp.array([n], dtype=jnp.int32)

    grid_spec = pltpu.PrefetchScalarGridSpec(
        num_scalar_prefetch=1,
        grid=(2, nt),                                                   # (pass, batch tile)
        in_specs=[
            pl.BlockSpec((tile_n, d_in), lambda p, i, nv: (i, 0)),      # x tiles (pipelined)
            pl.BlockSpec((d_in, h_dim), lambda p, i, nv: (0, 0)),       # w1 (VMEM-resident)
            pl.BlockSpec((h_dim, a_dim), lambda p, i, nv: (0, 0)),      # wa (VMEM-resident)
            pl.BlockSpec((h_dim, h_dim), lambda p, i, nv: (0, 0)),      # w2 (VMEM-resident)
            pl.BlockSpec((1, pack), lambda p, i, nv: (0, 0)),           # packed rows (resident)
        ],
        out_specs=pl.BlockSpec((tile_n, 2), lambda p, i, nv: (i, 0)),
        scratch_shapes=[pltpu.VMEM((1, 2), jnp.float32),                # running max
                        pltpu.VMEM((1, 2), jnp.float32)],               # running sum
    )

    packed = pl.pallas_call(
        classifier_attention_kernel,
        out_shape=jax.ShapeDtypeStruct((n_pad, 2), jnp.float32),
        grid_spec=grid_spec,
        compiler_params=pltpu.CompilerParams(
            # Sequential grid: the softmax normalizer is carried in shared VMEM
            # scratch across tiles and across the two passes (see module docstring
            # for the v7x per-core partial-reduction variant).
            dimension_semantics=("arbitrary", "arbitrary"),
            vmem_limit_bytes=32 * 1024 * 1024,
        ),
    )(nvalid, x, params["w1"], params["wa"], params["w2"], rows)

    out = packed[:n, 0:1]      # forward() return value, (N, 1)
    raw = packed[:n, 1]        # self.raw_attention_weights, (N,)
    return out, raw


def init_params(key, num_inputs, hidden_dim, attention_dim=10):
    """Deterministic synthetic parameters.

    fc1/fc2/attention_layer weights stored as (in, out); attention_score / fc3
    weights stored as (1, in) rows (native PyTorch layout, used for VPU reduce).
    """
    keys = jax.random.split(key, 8)

    def xavier(k, shape):
        limit = jnp.sqrt(6.0 / (shape[0] + shape[1]))
        return jax.random.uniform(k, shape, jnp.float32, -limit, limit)

    params = {
        "w1": jax.random.normal(keys[0], (num_inputs, hidden_dim), jnp.float32) * 0.1,
        "b1": jax.random.normal(keys[1], (1, hidden_dim), jnp.float32) * 0.1,
        "wa": jax.random.normal(keys[2], (hidden_dim, attention_dim), jnp.float32) * 0.1,
        "ba": jax.random.normal(keys[3], (1, attention_dim), jnp.float32) * 0.1,
        "ws": jax.random.normal(keys[4], (1, attention_dim), jnp.float32) * 0.1,
        "bs": jax.random.normal(keys[5], (1, 1), jnp.float32) * 0.1,
        "w2": jax.random.normal(keys[6], (hidden_dim, hidden_dim), jnp.float32) * 0.1,
        "b2": jax.random.normal(keys[7], (1, hidden_dim), jnp.float32) * 0.1,
        # fc3 initialized with 'xavier': xavier-uniform weight, zero bias
        "w3": xavier(jax.random.fold_in(key, 99), (1, hidden_dim)),
        "b3": jnp.zeros((1, 1), jnp.float32),
    }
    return params


def reference(x, p):
    h = jnp.tanh(x @ p["w1"] + p["b1"])
    a_pre = h @ p["wa"] + p["ba"]
    attn = jax.nn.softmax(jnp.tanh(a_pre) @ p["ws"].T + p["bs"], axis=0)
    raw = jax.nn.softmax((jnp.maximum(a_pre, 0.0) @ p["ws"].T + p["bs"])[:, 0], axis=0)
    h2 = jnp.tanh((h * attn) @ p["w2"] + p["b2"])
    return h2 @ p["w3"].T + p["b3"], raw


if __name__ == "__main__":
    N, NUM_INPUTS, HIDDEN, ATT = 8, 32, 32, 10

    key = jax.random.PRNGKey(0)
    kx, kp = jax.random.split(key)
    x = jax.random.normal(kx, (N, NUM_INPUTS), jnp.float32)
    params = init_params(kp, NUM_INPUTS, HIDDEN, ATT)

    out, raw = classifier_with_attention(x, params)
    out = jax.block_until_ready(out)
    raw = jax.block_until_ready(raw)

    ref_out, ref_raw = reference(x, params)
    assert out.shape == (N, 1) and raw.shape == (N,)
    assert jnp.allclose(out, ref_out, atol=1e-5, rtol=1e-5)
    assert jnp.allclose(raw, ref_raw, atol=1e-5, rtol=1e-5)

    print("KERNEL_OK")
</pallas_src>

<mosaic_0001>
module attributes {stable_mosaic.version = 11 : i64} {
  func.func @classifier_attention_kernel(%arg0: i32, %arg1: i32, %arg2: memref<1xi32, #tpu.memory_space<smem>>, %arg3: memref<8x32xf32, #tpu.memory_space<vmem>>, %arg4: memref<32x32xf32, #tpu.memory_space<vmem>>, %arg5: memref<32x10xf32, #tpu.memory_space<vmem>>, %arg6: memref<32x32xf32, #tpu.memory_space<vmem>>, %arg7: memref<1x128xf32, #tpu.memory_space<vmem>>, %arg8: memref<8x2xf32, #tpu.memory_space<vmem>>, %arg9: memref<1x2xf32, #tpu.memory_space<vmem>>, %arg10: memref<1x2xf32, #tpu.memory_space<vmem>>) attributes {dimension_semantics = [#tpu.dimension_semantics<arbitrary>, #tpu.dimension_semantics<arbitrary>], iteration_bounds = array<i64: 2, 1>, scalar_prefetch = 1 : i64, scratch_operands = 2 : i64, tpu.core_type = #tpu.core_type<tc>, window_params = [{transform_indices = @transform_0, window_bounds = array<i64: 8, 32>}, {pipeline_mode = #tpu.pipeline_mode<synchronous>, transform_indices = @transform_1, window_bounds = array<i64: 32, 32>}, {pipeline_mode = #tpu.pipeline_mode<synchronous>, transform_indices = @transform_2, window_bounds = array<i64: 32, 10>}, {pipeline_mode = #tpu.pipeline_mode<synchronous>, transform_indices = @transform_3, window_bounds = array<i64: 32, 32>}, {pipeline_mode = #tpu.pipeline_mode<synchronous>, transform_indices = @transform_4, window_bounds = array<i64: 1, 128>}, {transform_indices = @transform_5, window_bounds = array<i64: 8, 2>}]} {
    %c0 = arith.constant 0 : index
    %c0_0 = arith.constant 0 : index
    %0 = vector.load %arg7[%c0, %c0_0] : memref<1x128xf32, #tpu.memory_space<vmem>>, vector<1x128xf32>
    %1 = vector.extract_strided_slice %0 {offsets = [0, 0], sizes = [1, 32], strides = [1, 1]} : vector<1x128xf32> to vector<1x32xf32>
    %2 = vector.extract_strided_slice %0 {offsets = [0, 32], sizes = [1, 10], strides = [1, 1]} : vector<1x128xf32> to vector<1x10xf32>
    %3 = vector.extract_strided_slice %0 {offsets = [0, 42], sizes = [1, 1], strides = [1, 1]} : vector<1x128xf32> to vector<1x1xf32>
    %4 = vector.extract_strided_slice %0 {offsets = [0, 43], sizes = [1, 32], strides = [1, 1]} : vector<1x128xf32> to vector<1x32xf32>
    %5 = vector.extract_strided_slice %0 {offsets = [0, 75], sizes = [1, 1], strides = [1, 1]} : vector<1x128xf32> to vector<1x1xf32>
    %6 = vector.extract_strided_slice %0 {offsets = [0, 76], sizes = [1, 10], strides = [1, 1]} : vector<1x128xf32> to vector<1x10xf32>
    %7 = vector.extract_strided_slice %0 {offsets = [0, 86], sizes = [1, 32], strides = [1, 1]} : vector<1x128xf32> to vector<1x32xf32>
    %c0_i32 = arith.constant 0 : i32
    %8 = arith.cmpi eq, %arg0, %c0_i32 : i32
    %9 = arith.extui %8 : i1 to i32
    %c0_i32_1 = arith.constant 0 : i32
    %10 = arith.cmpi ne, %9, %c0_i32_1 : i32
    scf.if %10 {
      %c0_i32_3 = arith.constant 0 : i32
      %14 = arith.cmpi eq, %arg1, %c0_i32_3 : i32
      %15 = arith.extui %14 : i1 to i32
      %c0_i32_4 = arith.constant 0 : i32
      %16 = arith.cmpi ne, %15, %c0_i32_4 : i32
      scf.if %16 {
        %cst_27 = arith.constant -1.000000e+30 : f32
        %70 = vector.broadcast %cst_27 : f32 to vector<1x2xf32>
        %c0_28 = arith.constant 0 : index
        %c0_29 = arith.constant 0 : index
        %71 = vector.load %arg9[%c0_28, %c0_29] : memref<1x2xf32, #tpu.memory_space<vmem>>, vector<1x2xf32>
        tpu.vector_store %arg9[%c0_28, %c0_29], %70 {strides = array<i32>} : memref<1x2xf32, #tpu.memory_space<vmem>>, vector<1x2xf32>,
        %cst_30 = arith.constant 0.000000e+00 : f32
        %72 = vector.broadcast %cst_30 : f32 to vector<1x2xf32>
        %c0_31 = arith.constant 0 : index
        %c0_32 = arith.constant 0 : index
        %73 = vector.load %arg10[%c0_31, %c0_32] : memref<1x2xf32, #tpu.memory_space<vmem>>, vector<1x2xf32>
        tpu.vector_store %arg10[%c0_31, %c0_32], %72 {strides = array<i32>} : memref<1x2xf32, #tpu.memory_space<vmem>>, vector<1x2xf32>,
      } else {
      }
      %c0_5 = arith.constant 0 : index
      %c0_6 = arith.constant 0 : index
      %17 = vector.load %arg3[%c0_5, %c0_6] : memref<8x32xf32, #tpu.memory_space<vmem>>, vector<8x32xf32>
      %c0_7 = arith.constant 0 : index
      %c0_8 = arith.constant 0 : index
      %18 = vector.load %arg4[%c0_7, %c0_8] : memref<32x32xf32, #tpu.memory_space<vmem>>, vector<32x32xf32>
      %cst = arith.constant dense<0.000000e+00> : vector<8x32xf32>
      %19 = tpu.matmul %17, %18, %cst {dimension_numbers = #tpu.dot_dimension_numbers<[1], [0], [0], [1], [0, 0, 1, 1], [], []>} : vector<8x32xf32>, vector<32x32xf32>, vector<8x32xf32> -> vector<8x32xf32>
      %20 = vector.broadcast %1 : vector<1x32xf32> to vector<8x32xf32>
      %21 = arith.addf %19, %20 : vector<8x32xf32>
      %22 = math.tanh %21 : vector<8x32xf32>
      %c0_9 = arith.constant 0 : index
      %c0_10 = arith.constant 0 : index
      %23 = vector.load %arg5[%c0_9, %c0_10] : memref<32x10xf32, #tpu.memory_space<vmem>>, vector<32x10xf32>
      %cst_11 = arith.constant dense<0.000000e+00> : vector<8x10xf32>
      %24 = tpu.matmul %22, %23, %cst_11 {dimension_numbers = #tpu.dot_dimension_numbers<[1], [0], [0], [1], [0, 0, 1, 1], [], []>} : vector<8x32xf32>, vector<32x10xf32>, vector<8x10xf32> -> vector<8x10xf32>
      %25 = vector.broadcast %2 : vector<1x10xf32> to vector<8x10xf32>
      %26 = arith.addf %24, %25 : vector<8x10xf32>
      %27 = math.tanh %26 : vector<8x10xf32>
      %28 = vector.broadcast %6 : vector<1x10xf32> to vector<8x10xf32>
      %29 = arith.mulf %27, %28 : vector<8x10xf32>
      %cst_12 = arith.constant dense<0.000000e+00> : vector<8xf32>
      %30 = vector.multi_reduction <add>, %29, %cst_12 [1] : vector<8x10xf32> to vector<8xf32>
      %31 = vector.shape_cast %30 : vector<8xf32> to vector<8x1xf32>
      %32 = vector.broadcast %3 : vector<1x1xf32> to vector<8x1xf32>
      %33 = arith.addf %31, %32 : vector<8x1xf32>
      %cst_13 = arith.constant 0.000000e+00 : f32
      %34 = vector.broadcast %cst_13 : f32 to vector<8x10xf32>
      %35 = arith.maximumf %26, %34 : vector<8x10xf32>
      %36 = vector.broadcast %6 : vector<1x10xf32> to vector<8x10xf32>
      %37 = arith.mulf %35, %36 : vector<8x10xf32>
      %cst_14 = arith.constant dense<0.000000e+00> : vector<8xf32>
      %38 = vector.multi_reduction <add>, %37, %cst_14 [1] : vector<8x10xf32> to vector<8xf32>
      %39 = vector.shape_cast %38 : vector<8xf32> to vector<8x1xf32>
      %40 = vector.broadcast %3 : vector<1x1xf32> to vector<8x1xf32>
      %41 = arith.addf %39, %40 : vector<8x1xf32>
      %42 = tpu.concatenate %33, %41 in 1 : vector<8x1xf32>, vector<8x1xf32> -> vector<8x2xf32>
      %c8_i32 = arith.constant 8 : i32
      %43 = arith.muli %arg1, %c8_i32 : i32
      %44 = tpu.iota {dimensions = array<i32: 0>} : vector<8x1xi32>
      %45 = vector.broadcast %43 : i32 to vector<8x1xi32>
      %46 = arith.addi %45, %44 : vector<8x1xi32>
      %c0_15 = arith.constant 0 : index
      %47 = memref.load %arg2[%c0_15] : memref<1xi32, #tpu.memory_space<smem>>
      %48 = vector.broadcast %47 : i32 to vector<8x1xi32>
      %49 = arith.cmpi slt, %46, %48 : vector<8x1xi32>
      %cst_16 = arith.constant -1.000000e+30 : f32
      %50 = vector.shape_cast %49 : vector<8x1xi1> to vector<8x1xi1>
      %51 = vector.broadcast %50 : vector<8x1xi1> to vector<8x2xi1>
      %52 = vector.broadcast %cst_16 : f32 to vector<8x2xf32>
      %53 = arith.select %51, %42, %52 : vector<8x2xi1>, vector<8x2xf32>
      %c0_17 = arith.constant 0 : index
      %c0_18 = arith.constant 0 : index
      %54 = vector.load %arg9[%c0_17, %c0_18] : memref<1x2xf32, #tpu.memory_space<vmem>>, vector<1x2xf32>
      %cst_19 = arith.constant dense<0xFF800000> : vector<2xf32>
      %55 = vector.multi_reduction <maximumf>, %53, %cst_19 [0] : vector<8x2xf32> to vector<2xf32>
      %56 = vector.shape_cast %55 : vector<2xf32> to vector<1x2xf32>
      %57 = arith.maximumf %54, %56 : vector<1x2xf32>
      %c0_20 = arith.constant 0 : index
      %c0_21 = arith.constant 0 : index
      %58 = vector.load %arg10[%c0_20, %c0_21] : memref<1x2xf32, #tpu.memory_space<vmem>>, vector<1x2xf32>
      %59 = arith.subf %54, %57 : vector<1x2xf32>
      %60 = math.exp %59 : vector<1x2xf32>
      %61 = arith.mulf %58, %60 : vector<1x2xf32>
      %62 = vector.broadcast %57 : vector<1x2xf32> to vector<8x2xf32>
      %63 = arith.subf %53, %62 : vector<8x2xf32>
      %64 = math.exp %63 : vector<8x2xf32>
      %cst_22 = arith.constant dense<0.000000e+00> : vector<2xf32>
      %65 = vector.multi_reduction <add>, %64, %cst_22 [0] : vector<8x2xf32> to vector<2xf32>
      %66 = vector.shape_cast %65 : vector<2xf32> to vector<1x2xf32>
      %67 = arith.addf %61, %66 : vector<1x2xf32>
      %c0_23 = arith.constant 0 : index
      %c0_24 = arith.constant 0 : index
      %68 = vector.load %arg10[%c0_23, %c0_24] : memref<1x2xf32, #tpu.memory_space<vmem>>, vector<1x2xf32>
      tpu.vector_store %arg10[%c0_23, %c0_24], %67 {strides = array<i32>} : memref<1x2xf32, #tpu.memory_space<vmem>>, vector<1x2xf32>,
      %c0_25 = arith.constant 0 : index
      %c0_26 = arith.constant 0 : index
      %69 = vector.load %arg9[%c0_25, %c0_26] : memref<1x2xf32, #tpu.memory_space<vmem>>, vector<1x2xf32>
      tpu.vector_store %arg9[%c0_25, %c0_26], %57 {strides = array<i32>} : memref<1x2xf32, #tpu.memory_space<vmem>>, vector<1x2xf32>,
    } else {
    }
    %c1_i32 = arith.constant 1 : i32
    %11 = arith.cmpi eq, %arg0, %c1_i32 : i32
    %12 = arith.extui %11 : i1 to i32
    %c0_i32_2 = arith.constant 0 : i32
    %13 = arith.cmpi ne, %12, %c0_i32_2 : i32
    scf.if %13 {
      %c0_3 = arith.constant 0 : index
      %c0_4 = arith.constant 0 : index
      %14 = vector.load %arg3[%c0_3, %c0_4] : memref<8x32xf32, #tpu.memory_space<vmem>>, vector<8x32xf32>
      %c0_5 = arith.constant 0 : index
      %c0_6 = arith.constant 0 : index
      %15 = vector.load %arg4[%c0_5, %c0_6] : memref<32x32xf32, #tpu.memory_space<vmem>>, vector<32x32xf32>
      %cst = arith.constant dense<0.000000e+00> : vector<8x32xf32>
      %16 = tpu.matmul %14, %15, %cst {dimension_numbers = #tpu.dot_dimension_numbers<[1], [0], [0], [1], [0, 0, 1, 1], [], []>} : vector<8x32xf32>, vector<32x32xf32>, vector<8x32xf32> -> vector<8x32xf32>
      %17 = vector.broadcast %1 : vector<1x32xf32> to vector<8x32xf32>
      %18 = arith.addf %16, %17 : vector<8x32xf32>
      %19 = math.tanh %18 : vector<8x32xf32>
      %c0_7 = arith.constant 0 : index
      %c0_8 = arith.constant 0 : index
      %20 = vector.load %arg5[%c0_7, %c0_8] : memref<32x10xf32, #tpu.memory_space<vmem>>, vector<32x10xf32>
      %cst_9 = arith.constant dense<0.000000e+00> : vector<8x10xf32>
      %21 = tpu.matmul %19, %20, %cst_9 {dimension_numbers = #tpu.dot_dimension_numbers<[1], [0], [0], [1], [0, 0, 1, 1], [], []>} : vector<8x32xf32>, vector<32x10xf32>, vector<8x10xf32> -> vector<8x10xf32>
      %22 = vector.broadcast %2 : vector<1x10xf32> to vector<8x10xf32>
      %23 = arith.addf %21, %22 : vector<8x10xf32>
      %24 = math.tanh %23 : vector<8x10xf32>
      %25 = vector.broadcast %6 : vector<1x10xf32> to vector<8x10xf32>
      %26 = arith.mulf %24, %25 : vector<8x10xf32>
      %cst_10 = arith.constant dense<0.000000e+00> : vector<8xf32>
      %27 = vector.multi_reduction <add>, %26, %cst_10 [1] : vector<8x10xf32> to vector<8xf32>
      %28 = vector.shape_cast %27 : vector<8xf32> to vector<8x1xf32>
      %29 = vector.broadcast %3 : vector<1x1xf32> to vector<8x1xf32>
      %30 = arith.addf %28, %29 : vector<8x1xf32>
      %cst_11 = arith.constant 0.000000e+00 : f32
      %31 = vector.broadcast %cst_11 : f32 to vector<8x10xf32>
      %32 = arith.maximumf %23, %31 : vector<8x10xf32>
      %33 = vector.broadcast %6 : vector<1x10xf32> to vector<8x10xf32>
      %34 = arith.mulf %32, %33 : vector<8x10xf32>
      %cst_12 = arith.constant dense<0.000000e+00> : vector<8xf32>
      %35 = vector.multi_reduction <add>, %34, %cst_12 [1] : vector<8x10xf32> to vector<8xf32>
      %36 = vector.shape_cast %35 : vector<8xf32> to vector<8x1xf32>
      %37 = vector.broadcast %3 : vector<1x1xf32> to vector<8x1xf32>
      %38 = arith.addf %36, %37 : vector<8x1xf32>
      %39 = tpu.concatenate %30, %38 in 1 : vector<8x1xf32>, vector<8x1xf32> -> vector<8x2xf32>
      %c0_13 = arith.constant 0 : index
      %c0_14 = arith.constant 0 : index
      %40 = vector.load %arg10[%c0_13, %c0_14] : memref<1x2xf32, #tpu.memory_space<vmem>>, vector<1x2xf32>
      %41 = tpu.reciprocal %40 {approx = true} : vector<1x2xf32> -> vector<1x2xf32>
      %42 = arith.mulf %40, %41 : vector<1x2xf32>
      %cst_15 = arith.constant 2.000000e+00 : f32
      %43 = vector.broadcast %cst_15 : f32 to vector<1x2xf32>
      %44 = arith.subf %43, %42 : vector<1x2xf32>
      %45 = arith.mulf %41, %44 : vector<1x2xf32>
      %c0_16 = arith.constant 0 : index
      %c0_17 = arith.constant 0 : index
      %46 = vector.load %arg9[%c0_16, %c0_17] : memref<1x2xf32, #tpu.memory_space<vmem>>, vector<1x2xf32>
      %47 = vector.broadcast %46 : vector<1x2xf32> to vector<8x2xf32>
      %48 = arith.subf %39, %47 : vector<8x2xf32>
      %49 = math.exp %48 : vector<8x2xf32>
      %50 = vector.broadcast %45 : vector<1x2xf32> to vector<8x2xf32>
      %51 = arith.mulf %49, %50 : vector<8x2xf32>
      %52 = vector.extract_strided_slice %51 {offsets = [0, 0], sizes = [8, 1], strides = [1, 1]} : vector<8x2xf32> to vector<8x1xf32>
      %53 = vector.broadcast %52 : vector<8x1xf32> to vector<8x32xf32>
      %54 = arith.mulf %19, %53 : vector<8x32xf32>
      %c0_18 = arith.constant 0 : index
      %c0_19 = arith.constant 0 : index
      %55 = vector.load %arg6[%c0_18, %c0_19] : memref<32x32xf32, #tpu.memory_space<vmem>>, vector<32x32xf32>
      %cst_20 = arith.constant dense<0.000000e+00> : vector<8x32xf32>
      %56 = tpu.matmul %54, %55, %cst_20 {dimension_numbers = #tpu.dot_dimension_numbers<[1], [0], [0], [1], [0, 0, 1, 1], [], []>} : vector<8x32xf32>, vector<32x32xf32>, vector<8x32xf32> -> vector<8x32xf32>
      %57 = vector.broadcast %4 : vector<1x32xf32> to vector<8x32xf32>
      %58 = arith.addf %56, %57 : vector<8x32xf32>
      %59 = math.tanh %58 : vector<8x32xf32>
      %60 = vector.broadcast %7 : vector<1x32xf32> to vector<8x32xf32>
      %61 = arith.mulf %59, %60 : vector<8x32xf32>
      %cst_21 = arith.constant dense<0.000000e+00> : vector<8xf32>
      %62 = vector.multi_reduction <add>, %61, %cst_21 [1] : vector<8x32xf32> to vector<8xf32>
      %63 = vector.shape_cast %62 : vector<8xf32> to vector<8x1xf32>
      %64 = vector.broadcast %5 : vector<1x1xf32> to vector<8x1xf32>
      %65 = arith.addf %63, %64 : vector<8x1xf32>
      %66 = vector.extract_strided_slice %51 {offsets = [0, 1], sizes = [8, 1], strides = [1, 1]} : vector<8x2xf32> to vector<8x1xf32>
      %67 = tpu.concatenate %65, %66 in 1 : vector<8x1xf32>, vector<8x1xf32> -> vector<8x2xf32>
      %c0_22 = arith.constant 0 : index
      %c0_23 = arith.constant 0 : index
      %68 = vector.load %arg8[%c0_22, %c0_23] : memref<8x2xf32, #tpu.memory_space<vmem>>, vector<8x2xf32>
      tpu.vector_store %arg8[%c0_22, %c0_23], %67 {strides = array<i32>} : memref<8x2xf32, #tpu.memory_space<vmem>>, vector<8x2xf32>,
    } else {
    }
    return
  }
  func.func @transform_0(%arg0: i32, %arg1: i32, %arg2: memref<1xi32, #tpu.memory_space<smem>>) -> (i32, i32) {
    %c0_i32 = arith.constant 0 : i32
    %c0_i32_0 = arith.constant 0 : i32
    return %arg1, %c0_i32 : i32, i32
  }
  func.func @transform_1(%arg0: i32, %arg1: i32, %arg2: memref<1xi32, #tpu.memory_space<smem>>) -> (i32, i32) {
    %c0_i32 = arith.constant 0 : i32
    %c0_i32_0 = arith.constant 0 : i32
    %c0_i32_1 = arith.constant 0 : i32
    return %c0_i32, %c0_i32_0 : i32, i32
  }
  func.func @transform_2(%arg0: i32, %arg1: i32, %arg2: memref<1xi32, #tpu.memory_space<smem>>) -> (i32, i32) {
    %c0_i32 = arith.constant 0 : i32
    %c0_i32_0 = arith.constant 0 : i32
    %c0_i32_1 = arith.constant 0 : i32
    return %c0_i32, %c0_i32_0 : i32, i32
  }
  func.func @transform_3(%arg0: i32, %arg1: i32, %arg2: memref<1xi32, #tpu.memory_space<smem>>) -> (i32, i32) {
    %c0_i32 = arith.constant 0 : i32
    %c0_i32_0 = arith.constant 0 : i32
    %c0_i32_1 = arith.constant 0 : i32
    return %c0_i32, %c0_i32_0 : i32, i32
  }
  func.func @transform_4(%arg0: i32, %arg1: i32, %arg2: memref<1xi32, #tpu.memory_space<smem>>) -> (i32, i32) {
    %c0_i32 = arith.constant 0 : i32
    %c0_i32_0 = arith.constant 0 : i32
    %c0_i32_1 = arith.constant 0 : i32
    return %c0_i32, %c0_i32_0 : i32, i32
  }
  func.func @transform_5(%arg0: i32, %arg1: i32, %arg2: memref<1xi32, #tpu.memory_space<smem>>) -> (i32, i32) {
    %c0_i32 = arith.constant 0 : i32
    %c0_i32_0 = arith.constant 0 : i32
    return %arg1, %c0_i32 : i32, i32
  }
}

</mosaic_0001>

<llo_original>
// kernel: tpu_custom_call.1
$region0: #{tpu_custom_call.1}
  #allocation0 [shape = 'u32[]', space=smem, size = 0x4, offset = 0x4, fixed_abs, tag = 'smem constant byte address 0x4 - core index']
  #allocation1 [shape = 'u32[144,128]{1,0:T(1,128)}', space=vmem, size = 0x12000, scoped, tag = 'internal scratch']
  #allocation2 [shape = 'f32[1,2]{1,0:T(1,128)}', space=vmem, size = 0x200, scoped, tag = 'scratch operand']
  #allocation3 [shape = 'f32[1,2]{1,0:T(1,128)}', space=vmem, size = 0x200, scoped, tag = 'scratch operand']
  #allocation4 [shape = 's32[1]{0}', space=sflag, size = 0x4, scoped, tag = 'scoped memory for tpu_custom_call.1']
  #allocation5 [shape = 's32[1]{0:T(128)S(6)}', space=smem, size = 0x200, scoped, tag = 'prefetched SMEM operand 0']
  %s0 = inlined_call_operand.<no memory space> [shape: s32[1], index: 0, kind: input, shape index: {}]
  %s1 = inlined_call_operand.vmem [shape: f32[8,32], index: 1, kind: input, shape index: {}]
  %s2 = inlined_call_operand.vmem [shape: f32[32,32], index: 2, kind: input, shape index: {}]
  %s3 = inlined_call_operand.vmem [shape: f32[32,10], index: 3, kind: input, shape index: {}]
  %s4 = inlined_call_operand.hbm [shape: f32[32,32], index: 4, kind: input, shape index: {}]
  %s5 = inlined_call_operand.vmem [shape: f32[1,128], index: 5, kind: input, shape index: {}]
  %s6 = inlined_call_operand.vmem [shape: f32[8,2], index: 6, kind: output, shape index: {}]
  %s7 = sld [smem:[#allocation0]]
  $region69: #{tpu_custom_call.1} parent=0
    _
  %s9 = ssub.s32 1, %s7
  %s10 = scalar_select 0, %s9, %s7
  %11 = sst [smem:[#allocation5]] %s0
  $region1: #{tpu_custom_call.1} parent=0
    #allocation6 [shape = 'u8[16384]{0}', space=vmem, size = 0x4000, scoped, tag = 'input window, operand 4, single buffered']
    #allocation7 [shape = 's32[2]{0}', space=sflag, size = 0x8, scoped, tag = 'scoped memory for tpu_custom_call.1']
    %12 = vsyncpa [#allocation7], 0
    loop: start=0, step=1, limit=4
    $region2: #{tpu_custom_call.1} parent=1 // loop_pre_header
      _
    $region3: #{tpu_custom_call.1} parent=1 // loop_header
      %s14 = sphi 0, %s18
      %p15 = scmp.ge.s32.totalorder %s14, 4
      %s21 = sphi 0, %s33
      %s22 = sphi 0, %s29
      %s23 = sphi 0, %s21
      %s24 = sphi 0, %s22
      %s25 = sphi 0, %s23
      %s26 = sphi 0, %s24
      %s36 = sphi 0, %s38
      %s39 = sphi 0, %s36
      %s40 = sphi 0, %s39
      %s56 = sphi 0, %s40
      %s60 = sphi 0, %s60
      %s62 = sphi 0, %s60
      %s63 = sphi 0, %s62
      %s77 = sphi 0, %s63
      %s81 = sphi 0, %s81
      %s83 = sphi 0, %s81
      %s84 = sphi 0, %s83
      %s98 = sphi 0, %s84
      %s102 = sphi 0, %s102
      %s104 = sphi 0, %s102
      %s105 = sphi 0, %s104
      %s119 = sphi 0, %s105
      %s123 = sphi 0, %s123
      %s125 = sphi 0, %s123
      %s126 = sphi 0, %s125
      %s140 = sphi 0, %s126
      %s146 = sphi 0, %s148
      %s149 = sphi 0, %s146
      %s150 = sphi 0, %s149
      %s166 = sphi 0, %s150
    $region4: #{tpu_custom_call.1} parent=1 // loop_header_branch
      %17 = sbr.rel (%p15) target = $region8
    $region5: #{tpu_custom_call.1} parent=1 // loop_body
      %s19 = ssub.s32 %s14, 1
      %s20 = ssub.s32 %s14, 2
      %s27 = sadd.s32 1, %s22
      %p28 = scmp.ge.s32.totalorder %s27, 1
      %s29 = scalar_select %p28, 0, %s27
      %s30 = sadd.s32 1, %s21
      %s31 = scalar_select %p28, %s30, %s21
      %p32 = scmp.ge.s32.totalorder %s31, 2
      %s33 = scalar_select %p32, 0, %s31
      %s34 = ssub.s32 %s22, %s29
      %p35 = scmp.eq.s32.totalorder %s34, 0
      %s37 = sadd.s32 %s36, 1
      %s38 = scalar_select %p35, %s36, %s37
      %p41 = pneg %p35
      %p42 = scmp.eq.s32.totalorder %s14, 1
      %p43 = por %p41, %p42
      %p44 = scmp.ne.s32.totalorder %s36, %s39
      %p45 = scmp.eq.s32.totalorder %s14, 0
      %p46 = por %p44, %p45
      %p47 = scmp.ne.s32.totalorder %s36, %s39
      %p48 = scmp.eq.s32.totalorder %s19, 1
      %p49 = por %p47, %p48
      %p50 = scmp.ne.s32.totalorder %s39, %s40
      %p51 = scmp.eq.s32.totalorder %s19, 0
      %p52 = por %p50, %p51
      %p53 = scmp.ne.s32.totalorder %s39, %s40
      %p54 = scmp.eq.s32.totalorder %s20, 1
      %p55 = por %p53, %p54
      %p57 = scmp.ne.s32.totalorder %s40, %s56
      %p58 = scmp.eq.s32.totalorder %s20, 0
      %p59 = por %p57, %p58
      %s61 = sadd.s32 %s60, 1
      %p64 = scmp.eq.s32.totalorder %s14, 1
      %p65 = scmp.ne.s32.totalorder %s60, %s62
      %p66 = scmp.eq.s32.totalorder %s14, 0
      %p67 = por %p65, %p66
      %p68 = scmp.ne.s32.totalorder %s60, %s62
      %p69 = scmp.eq.s32.totalorder %s19, 1
      %p70 = por %p68, %p69
      %p71 = scmp.ne.s32.totalorder %s62, %s63
      %p72 = scmp.eq.s32.totalorder %s19, 0
      %p73 = por %p71, %p72
      %p74 = scmp.ne.s32.totalorder %s62, %s63
      %p75 = scmp.eq.s32.totalorder %s20, 1
      %p76 = por %p74, %p75
      %p78 = scmp.ne.s32.totalorder %s63, %s77
      %p79 = scmp.eq.s32.totalorder %s20, 0
      %p80 = por %p78, %p79
      %s82 = sadd.s32 %s81, 1
      %p85 = scmp.eq.s32.totalorder %s14, 1
      %p86 = scmp.ne.s32.totalorder %s81, %s83
      %p87 = scmp.eq.s32.totalorder %s14, 0
      %p88 = por %p86, %p87
      %p89 = scmp.ne.s32.totalorder %s81, %s83
      %p90 = scmp.eq.s32.totalorder %s19, 1
      %p91 = por %p89, %p90
      %p92 = scmp.ne.s32.totalorder %s83, %s84
      %p93 = scmp.eq.s32.totalorder %s19, 0
      %p94 = por %p92, %p93
      %p95 = scmp.ne.s32.totalorder %s83, %s84
      %p96 = scmp.eq.s32.totalorder %s20, 1
      %p97 = por %p95, %p96
      %p99 = scmp.ne.s32.totalorder %s84, %s98
      %p100 = scmp.eq.s32.totalorder %s20, 0
      %p101 = por %p99, %p100
      %s103 = sadd.s32 %s102, 1
      %p106 = scmp.eq.s32.totalorder %s14, 1
      %p107 = scmp.ne.s32.totalorder %s102, %s104
      %p108 = scmp.eq.s32.totalorder %s14, 0
      %p109 = por %p107, %p108
      %p110 = scmp.ne.s32.totalorder %s102, %s104
      %p111 = scmp.eq.s32.totalorder %s19, 1
      %p112 = por %p110, %p111
      %p113 = scmp.ne.s32.totalorder %s104, %s105
      %p114 = scmp.eq.s32.totalorder %s19, 0
      %p115 = por %p113, %p114
      %p116 = scmp.ne.s32.totalorder %s104, %s105
      %p117 = scmp.eq.s32.totalorder %s20, 1
      %p118 = por %p116, %p117
      %p120 = scmp.ne.s32.totalorder %s105, %s119
      %p121 = scmp.eq.s32.totalorder %s20, 0
      %p122 = por %p120, %p121
      %s124 = sadd.s32 %s123, 1
      %p127 = scmp.eq.s32.totalorder %s14, 1
      %p128 = scmp.ne.s32.totalorder %s123, %s125
      %p129 = scmp.eq.s32.totalorder %s14, 0
      %p130 = por %p128, %p129
      %p131 = scmp.ne.s32.totalorder %s123, %s125
      %p132 = scmp.eq.s32.totalorder %s19, 1
      %p133 = por %p131, %p132
      %p134 = scmp.ne.s32.totalorder %s125, %s126
      %p135 = scmp.eq.s32.totalorder %s19, 0
      %p136 = por %p134, %p135
      %p137 = scmp.ne.s32.totalorder %s125, %s126
      %p138 = scmp.eq.s32.totalorder %s20, 1
      %p139 = por %p137, %p138
      %p141 = scmp.ne.s32.totalorder %s126, %s140
      %p142 = scmp.eq.s32.totalorder %s20, 0
      %p143 = por %p141, %p142
      %s144 = ssub.s32 %s22, %s29
      %p145 = scmp.eq.s32.totalorder %s144, 0
      %s147 = sadd.s32 %s146, 1
      %s148 = scalar_select %p145, %s146, %s147
      %p151 = pneg %p145
      %p152 = scmp.eq.s32.totalorder %s14, 1
      %p153 = por %p151, %p152
      %p154 = scmp.ne.s32.totalorder %s146, %s149
      %p155 = scmp.eq.s32.totalorder %s14, 0
      %p156 = por %p154, %p155
      %p157 = scmp.ne.s32.totalorder %s146, %s149
      %p158 = scmp.eq.s32.totalorder %s19, 1
      %p159 = por %p157, %p158
      %p160 = scmp.ne.s32.totalorder %s149, %s150
      %p161 = scmp.eq.s32.totalorder %s19, 0
      %p162 = por %p160, %p161
      %p163 = scmp.ne.s32.totalorder %s149, %s150
      %p164 = scmp.eq.s32.totalorder %s20, 1
      %p165 = por %p163, %p164
      %p167 = scmp.ne.s32.totalorder %s150, %s166
      %p168 = scmp.eq.s32.totalorder %s20, 0
      %p169 = por %p167, %p168
      %p170 = scmp.le.s32.totalorder 1, %s14
      %p171 = scmp.lt.s32.totalorder %s14, 3
      %p172 = pnand %p170, %p171
      %p173 = pneg %p172
      // Predicated region
      $region9: #{tpu_custom_call.1} parent=5 // pred_check
        _
      $region10: #{tpu_custom_call.1} parent=5 // pred_check_branch
        %175 = sbr.rel (%p172) target = $region12
      $region11: #{tpu_custom_call.1} parent=5 // pred_region
        %s176 = ssub.s32 %s14, 1
        // Predicated region
        $region13: #{tpu_custom_call.1} parent=11 // pred_check
          %p177 = pneg %p52
        $region14: #{tpu_custom_call.1} parent=11 // pred_check_branch
          %179 = sbr.rel (%p177) target = $region16
        $region15: #{tpu_custom_call.1} parent=11 // pred_region
          %p180 = scmp.lt.s32.totalorder %s24, 0
          %s181 = scalar_select %p180, %s24, 0
          %s182 = smul.addr %s181, 8
          %s183 = scalar_lea.vmem %s1, %s182
        $region16: #{tpu_custom_call.1} parent=11 // pred_fallthru
          _
        // Predicated region
        $region17: #{tpu_custom_call.1} parent=11 // pred_check
          %p184 = pneg %p73
        $region18: #{tpu_custom_call.1} parent=11 // pred_check_branch
          %186 = sbr.rel (%p184) target = $region20
        $region19: #{tpu_custom_call.1} parent=11 // pred_region
          _
        $region20: #{tpu_custom_call.1} parent=11 // pred_fallthru
          _
        // Predicated region
        $region21: #{tpu_custom_call.1} parent=11 // pred_check
          %p187 = pneg %p94
        $region22: #{tpu_custom_call.1} parent=11 // pred_check_branch
          %189 = sbr.rel (%p187) target = $region24
        $region23: #{tpu_custom_call.1} parent=11 // pred_region
          _
        $region24: #{tpu_custom_call.1} parent=11 // pred_fallthru
          _
        // Predicated region
        $region25: #{tpu_custom_call.1} parent=11 // pred_check
          %p190 = pneg %p115
        $region26: #{tpu_custom_call.1} parent=11 // pred_check_branch
          %192 = sbr.rel (%p190) target = $region28
        $region27: #{tpu_custom_call.1} parent=11 // pred_region
          %s194 = ssub.s32 512, 512
          %195 = vsyncadd [#allocation7], %s194
          %s196 = sshll.u32 [#allocation6], 4
          %s197 = int_to_ptr.vmem [resolvable:$true] %s196
          %202 = dma.hbm_to_vmem [thread:$0]  %s4, 512, %s197, [#allocation7], 128, 128, 8
        $region28: #{tpu_custom_call.1} parent=11 // pred_fallthru
          _
        // Predicated region
        $region29: #{tpu_custom_call.1} parent=11 // pred_check
          %p203 = pneg %p136
        $region30: #{tpu_custom_call.1} parent=11 // pred_check_branch
          %205 = sbr.rel (%p203) target = $region32
        $region31: #{tpu_custom_call.1} parent=11 // pred_region
          _
        $region32: #{tpu_custom_call.1} parent=11 // pred_fallthru
          _
      $region12: #{tpu_custom_call.1} parent=5 // pred_fallthru
        _
      %p206 = scmp.lt.s32.totalorder %s14, 2
      // Predicated region
      $region33: #{tpu_custom_call.1} parent=5 // pred_check
        %p207 = pneg %p206
      $region34: #{tpu_custom_call.1} parent=5 // pred_check_branch
        %209 = sbr.rel (%p207) target = $region36
      $region35: #{tpu_custom_call.1} parent=5 // pred_region
        _
      $region36: #{tpu_custom_call.1} parent=5 // pred_fallthru
        _
      %p210 = scmp.le.s32.totalorder 1, %s14
      %p211 = scmp.lt.s32.totalorder %s14, 3
      %p212 = pnand %p210, %p211
      %p213 = pneg %p212
      // Predicated region
      $region37: #{tpu_custom_call.1} parent=5 // pred_check
        _
      $region38: #{tpu_custom_call.1} parent=5 // pred_check_branch
        %215 = sbr.rel (%p212) target = $region40
      $region39: #{tpu_custom_call.1} parent=5 // pred_region
        %s216 = ssub.s32 %s14, 1
        // Predicated region
        $region41: #{tpu_custom_call.1} parent=39 // pred_check
          %p217 = pneg %p115
        $region42: #{tpu_custom_call.1} parent=39 // pred_check_branch
          %219 = sbr.rel (%p217) target = $region44
        $region43: #{tpu_custom_call.1} parent=39 // pred_region
          %220 = dma.done [#allocation7], 512
        $region44: #{tpu_custom_call.1} parent=39 // pred_fallthru
          _
        %p221 = scmp.lt.s32.totalorder %s24, 0
        %s222 = scalar_select %p221, %s24, 0
        %s223 = smul.addr %s222, 8
        %s224 = scalar_lea.vmem %s1, %s223
        %p225 = pneg %p52
        %p226 = pneg %p49
        %p227 = pneg %p73
        %p228 = pneg %p70
        %p229 = pneg %p94
        %p230 = pneg %p91
        %p231 = pneg %p115
        %p232 = pneg %p112
        %p233 = pneg %p136
        %p234 = pneg %p133
        %p235 = pneg %p162
        %p236 = pneg %p159
        %p237 = scmp.lt.s32.totalorder %s24, 0
        %s238 = scalar_select %p237, %s24, 0
        %s239 = smul.addr %s238, 8
        %s240 = scalar_lea.vmem %s6, %s239
        %p241 = scmp.lt.s32.totalorder %s24, 0
        %s242 = scalar_select %p241, %s24, 0
        %s243 = smul.addr %s242, 8
        %s244 = scalar_lea.vmem %s1, %s243
        %p245 = scmp.lt.s32.totalorder %s24, 0
        %s246 = scalar_select %p245, %s24, 0
        %s247 = smul.addr %s246, 8
        %s248 = scalar_lea.vmem %s6, %s247
        %v249 = vld [vmem:[%s5] sm:$0x1]
        %p250 = scmp.eq.s32.totalorder %s23, 0
        // Predicated region
        $region45: #{tpu_custom_call.1} parent=39 // pred_check
          %p251 = pneg %p250
        $region46: #{tpu_custom_call.1} parent=39 // pred_check_branch
          %253 = sbr.rel (%p251) target = $region48
        $region47: #{tpu_custom_call.1} parent=39 // pred_region
          %p254 = scmp.eq.s32.totalorder %s24, 0
          // Predicated region
          $region49: #{tpu_custom_call.1} parent=47 // pred_check
            %p255 = pneg %p254
          $region50: #{tpu_custom_call.1} parent=47 // pred_check_branch
            %257 = sbr.rel (%p255) target = $region52
          $region51: #{tpu_custom_call.1} parent=47 // pred_region
            %vm258 = vcmask 8192
            %259 = vst.msk [vmem:[#allocation2] sm:$0x1] %vm258, -1e+30
            %260 = vst.msk [vmem:[#allocation3] sm:$0x1] %vm258, 0.0
          $region52: #{tpu_custom_call.1} parent=47 // pred_fallthru
            _
          %v261 = vld [vmem:[%s244] sm:$0xff]
          %v262 = vld [vmem:[%s2] sm:$0xff]
          %v263 = vld [vmem:[%s2 + $0x8] sm:$0xff]
          %v264 = vld [vmem:[%s2 + $0x10] sm:$0xff]
          %v265 = vld [vmem:[%s2 + $0x18] sm:$0xff]
          %v267 = vlaneseq
          %v268 = vshrl.u32 %v267, 7
          %v269 = vsub.s32 0, %v268
          %v270 = vrot.slane %v249, %v269
          %vm272 = vcmask 261120
          %v274 = vsel %vm272, %v261, 0
          %276 = vmatprep.subr.mxu0 0.0
          %277 = vmatpush1.msra.mxu0 %v262
          %278 = vmatprep.subr.mxu0 0.0
          %279 = vmatpush1.msra.mxu0 %v263
          %280 = vmatprep.subr.mxu0 0.0
          %281 = vmatpush1.msra.mxu0 %v264
          %282 = vmatprep.subr.mxu0 0.0
          %283 = vmatpush1.msra.mxu0 %v265
          %284 = vmatprep.subr.mxu0 0.0
          %285 = vmatpush1.msra.mxu0 0.0
          %286 = vmatprep.subr.mxu0 0.0
          %287 = vmatpush1.msra.mxu0 0.0
          %288 = vmatprep.subr.mxu0 0.0
          %289 = vmatpush1.msra.mxu0 0.0
          %290 = vmatprep.subr.mxu0 0.0
          %291 = vmatpush1.msra.mxu0 0.0
          %292 = vmatprep.subr.mxu0 0.0
          %293 = vmatpush1.msra.mxu0 0.0
          %294 = vmatprep.subr.mxu0 0.0
          %295 = vmatpush1.msra.mxu0 0.0
          %296 = vmatprep.subr.mxu0 0.0
          %297 = vmatpush1.msra.mxu0 0.0
          %298 = vmatprep.subr.mxu0 0.0
          %299 = vmatpush1.msra.mxu0 0.0
          %300 = vmatprep.subr.mxu0 0.0
          %301 = vmatpush1.msra.mxu0 0.0
          %302 = vmatprep.subr.mxu0 0.0
          %303 = vmatpush1.msra.mxu0 0.0
          %304 = vmatprep.subr.mxu0 0.0
          %305 = vmatpush1.msra.mxu0 0.0
          %306 = vmatprep.subr.mxu0 0.0
          %307 = vmatpush1.msra.mxu0 0.0
          %308 = vmatprep.subr.mxu0 0.0
          %309 = vmatpush1.msra.mxu0 0.0
          %310 = vmatprep.subr.mxu0 0.0
          %311 = vmatpush1.msra.mxu0 0.0
          %312 = vmatprep.subr.mxu0 0.0
          %313 = vmatpush1.msra.mxu0 0.0
          %314 = vmatprep.subr.mxu0 0.0
          %315 = vmatpush1.msra.mxu0 0.0
          %316 = vmatprep.subr.mxu0 0.0
          %317 = vmatpush1.msra.mxu0 0.0
          %318 = vmatprep.subr.mxu0 0.0
          %319 = vmatpush1.msra.mxu0 0.0
          %320 = vmatprep.subr.mxu0 0.0
          %321 = vmatpush1.msra.mxu0 0.0
          %322 = vmatprep.subr.mxu0 0.0
          %323 = vmatpush1.msra.mxu0 0.0
          %324 = vmatprep.subr.mxu0 0.0
          %325 = vmatpush1.msra.mxu0 0.0
          %326 = vmatprep.subr.mxu0 0.0
          %327 = vmatpush1.msra.mxu0 0.0
          %328 = vmatprep.subr.mxu0 0.0
          %329 = vmatpush1.msra.mxu0 0.0
          %330 = vmatprep.subr.mxu0 0.0
          %331 = vmatpush1.msra.mxu0 0.0
          %332 = vmatprep.subr.mxu0 0.0
          %333 = vmatpush1.msra.mxu0 0.0
          %334 = vmatprep.subr.mxu0 0.0
          %335 = vmatpush1.msra.mxu0 0.0
          %336 = vmatprep.subr.mxu0 0.0
          %337 = vmatpush1.msra.mxu0 0.0
          %338 = vmatprep.subr.mxu0 0.0
          %339 = vmatpush1.msra.mxu0 0.0
          %340 = vmatprep.mubr.f32.mxu0 0.0
          %341 = vmatmul.mubr.f32.gmra.mrb[0].mxu0 %v274
          %v342 = vpop.f32.mrb[0].mxu0
          %v343 = vadd.f32 %v270, %v342
          %v344 = vpop.f32.mrb[0].mxu0
          %345 = vdwg.mxu0
          %v346 = vtanh.pop %v343
          %v347 = vld [vmem:[%s3] sm:$0xff]
          %v348 = vld [vmem:[%s3 + $0x8] sm:$0xff]
          %v349 = vld [vmem:[%s3 + $0x10] sm:$0xff]
          %v350 = vld [vmem:[%s3 + $0x18] sm:$0xff]
          %351 = vrot.lane.b32.xlu0 %v270, 96
          %v352 = vpop.permute.xlu0 %351
          %v355 = vsel %vm272, %v346, 0
          %357 = vmatprep.subr.mxu0 0.0
          %358 = vmatpush1.msra.mxu0 %v347
          %359 = vmatprep.subr.mxu0 0.0
          %360 = vmatpush1.msra.mxu0 %v348
          %361 = vmatprep.subr.mxu0 0.0
          %362 = vmatpush1.msra.mxu0 %v349
          %363 = vmatprep.subr.mxu0 0.0
          %364 = vmatpush1.msra.mxu0 %v350
          %365 = vmatprep.subr.mxu0 0.0
          %366 = vmatpush1.msra.mxu0 0.0
          %367 = vmatprep.subr.mxu0 0.0
          %368 = vmatpush1.msra.mxu0 0.0
          %369 = vmatprep.subr.mxu0 0.0
          %370 = vmatpush1.msra.mxu0 0.0
          %371 = vmatprep.subr.mxu0 0.0
          %372 = vmatpush1.msra.mxu0 0.0
          %373 = vmatprep.subr.mxu0 0.0
          %374 = vmatpush1.msra.mxu0 0.0
          %375 = vmatprep.subr.mxu0 0.0
          %376 = vmatpush1.msra.mxu0 0.0
          %377 = vmatprep.subr.mxu0 0.0
          %378 = vmatpush1.msra.mxu0 0.0
          %379 = vmatprep.subr.mxu0 0.0
          %380 = vmatpush1.msra.mxu0 0.0
          %381 = vmatprep.subr.mxu0 0.0
          %382 = vmatpush1.msra.mxu0 0.0
          %383 = vmatprep.subr.mxu0 0.0
          %384 = vmatpush1.msra.mxu0 0.0
          %385 = vmatprep.subr.mxu0 0.0
          %386 = vmatpush1.msra.mxu0 0.0
          %387 = vmatprep.subr.mxu0 0.0
          %388 = vmatpush1.msra.mxu0 0.0
          %389 = vmatprep.subr.mxu0 0.0
          %390 = vmatpush1.msra.mxu0 0.0
          %391 = vmatprep.subr.mxu0 0.0
          %392 = vmatpush1.msra.mxu0 0.0
          %393 = vmatprep.subr.mxu0 0.0
          %394 = vmatpush1.msra.mxu0 0.0
          %395 = vmatprep.subr.mxu0 0.0
          %396 = vmatpush1.msra.mxu0 0.0
          %397 = vmatprep.subr.mxu0 0.0
          %398 = vmatpush1.msra.mxu0 0.0
          %399 = vmatprep.subr.mxu0 0.0
          %400 = vmatpush1.msra.mxu0 0.0
          %401 = vmatprep.subr.mxu0 0.0
          %402 = vmatpush1.msra.mxu0 0.0
          %403 = vmatprep.subr.mxu0 0.0
          %404 = vmatpush1.msra.mxu0 0.0
          %405 = vmatprep.subr.mxu0 0.0
          %406 = vmatpush1.msra.mxu0 0.0
          %407 = vmatprep.subr.mxu0 0.0
          %408 = vmatpush1.msra.mxu0 0.0
          %409 = vmatprep.subr.mxu0 0.0
          %410 = vmatpush1.msra.mxu0 0.0
          %411 = vmatprep.subr.mxu0 0.0
          %412 = vmatpush1.msra.mxu0 0.0
          %413 = vmatprep.subr.mxu0 0.0
          %414 = vmatpush1.msra.mxu0 0.0
          %415 = vmatprep.subr.mxu0 0.0
          %416 = vmatpush1.msra.mxu0 0.0
          %417 = vmatprep.subr.mxu0 0.0
          %418 = vmatpush1.msra.mxu0 0.0
          %419 = vmatprep.subr.mxu0 0.0
          %420 = vmatpush1.msra.mxu0 0.0
          %421 = vmatprep.mubr.f32.mxu0 0.0
          %422 = vmatmul.mubr.f32.gmra.mrb[0].mxu0 %v355
          %v423 = vpop.f32.mrb[0].mxu0
          %v424 = vadd.f32 %v352, %v423
          %v425 = vpop.f32.mrb[0].mxu0
          %426 = vdwg.mxu0
          %v427 = vtanh.pop %v424
          %428 = vrot.lane.b32.xlu0 %v270, 52
          %v429 = vpop.permute.xlu0 %428
          %v431 = vmul.f32 %v427, %v429
          %vm432 = vcmask 80896
          %v433 = vsel %vm432, %v431, 0.0
          %434 = vadd.xlane.f32.xlu0 %v433
          %v435 = vpop.xlane.xlu0 %434
          %v436 = vadd.f32 %v435, %v270
          %v437 = vmax.f32 %v424, 0.0
          %v438 = vmul.f32 %v437, %v429
          %v439 = vsel %vm432, %v438, 0.0
          %440 = vadd.xlane.f32.xlu0 %v439
          %v441 = vpop.xlane.xlu0 %440
          %v442 = vadd.f32 %v441, %v270
          %444 = vrot.lane.b32.xlu0 %v436, 86
          %v445 = vpop.permute.xlu0 %444
          %448 = vrot.lane.b32.xlu0 %v442, 87
          %v449 = vpop.permute.xlu0 %448
          %vm451 = vcmask 7168
          %v452 = vsel %vm451, %v445, %v449
          %s453 = smul.u32 %s24, 8
          %v454 = vlaneseq
          %v455 = vshrl.u32 %v454, 7
          %v456 = vstv %s453
          %v457 = vadd.s32 %v456, %v455
          %s458 = sld [smem:[#allocation5]]
          %v459 = vstv %s458
          %vm460 = vcmp.lt.s32.totalorder %v457, %v459
          %v461 = vsel %vm460, 1, 0
          %vm462 = vcmp.eq.s32.totalorder %v461, 1
          %v463 = vsel %vm462, %v452, -1e+30
          %v464 = vld [vmem:[#allocation2] sm:$0x1]
          %vm465 = vcmask 15360
          %v466 = vsel %vm465, %v463, -inf
          %v467 = vrot.slane %v466, 4
          %v468 = vmax.f32 %v466, %v467
          %v469 = vrot.slane %v468, 2
          %v470 = vmax.f32 %v468, %v469
          %v471 = vrot.slane %v470, 1
          %v472 = vmax.f32 %v470, %v471
          %v473 = vmax.f32 %v464, %v472
          %v474 = vld [vmem:[#allocation3] sm:$0x1]
          %v475 = vsub.f32 %v464, %v473
          %v476 = vmul.f32 %v475, 1.442695
          %v477 = vpow.pop %v476
          %v478 = vmul.f32 %v474, %v477
          %v480 = vlaneseq
          %v481 = vshrl.u32 %v480, 7
          %v482 = vsub.s32 0, %v481
          %v483 = vrot.slane %v473, %v482
          %v485 = vsub.f32 %v463, %v483
          %v486 = vmul.f32 %v485, 1.442695
          %v487 = vpow.pop %v486
          %v488 = vsel %vm465, %v487, 0.0
          %v489 = vrot.slane %v488, 4
          %v490 = vadd.f32 %v488, %v489
          %v491 = vrot.slane %v490, 2
          %v492 = vadd.f32 %v490, %v491
          %v493 = vrot.slane %v492, 1
          %v494 = vadd.f32 %v492, %v493
          %v495 = vadd.f32 %v478, %v494
          %vm496 = vcmask 8192
          %497 = vst.msk [vmem:[#allocation3] sm:$0x1] %vm496, %v495
          %498 = vst.msk [vmem:[#allocation2] sm:$0x1] %vm496, %v473
        $region48: #{tpu_custom_call.1} parent=39 // pred_fallthru
          _
        %p499 = scmp.eq.s32.totalorder %s23, 1
        // Predicated region
        $region53: #{tpu_custom_call.1} parent=39 // pred_check
          %p500 = pneg %p499
        $region54: #{tpu_custom_call.1} parent=39 // pred_check_branch
          %502 = sbr.rel (%p500) target = $region56
        $region55: #{tpu_custom_call.1} parent=39 // pred_region
          %v503 = vld [vmem:[%s244] sm:$0xff]
          %v504 = vld [vmem:[%s2] sm:$0xff]
          %v505 = vld [vmem:[%s2 + $0x8] sm:$0xff]
          %v506 = vld [vmem:[%s2 + $0x10] sm:$0xff]
          %v507 = vld [vmem:[%s2 + $0x18] sm:$0xff]
          %v509 = vlaneseq
          %v510 = vshrl.u32 %v509, 7
          %v511 = vsub.s32 0, %v510
          %v512 = vrot.slane %v249, %v511
          %vm514 = vcmask 261120
          %v516 = vsel %vm514, %v503, 0
          %518 = vmatprep.subr.mxu0 0.0
          %519 = vmatpush1.msra.mxu0 %v504
          %520 = vmatprep.subr.mxu0 0.0
          %521 = vmatpush1.msra.mxu0 %v505
          %522 = vmatprep.subr.mxu0 0.0
          %523 = vmatpush1.msra.mxu0 %v506
          %524 = vmatprep.subr.mxu0 0.0
          %525 = vmatpush1.msra.mxu0 %v507
          %526 = vmatprep.subr.mxu0 0.0
          %527 = vmatpush1.msra.mxu0 0.0
          %528 = vmatprep.subr.mxu0 0.0
          %529 = vmatpush1.msra.mxu0 0.0
          %530 = vmatprep.subr.mxu0 0.0
          %531 = vmatpush1.msra.mxu0 0.0
          %532 = vmatprep.subr.mxu0 0.0
          %533 = vmatpush1.msra.mxu0 0.0
          %534 = vmatprep.subr.mxu0 0.0
          %535 = vmatpush1.msra.mxu0 0.0
          %536 = vmatprep.subr.mxu0 0.0
          %537 = vmatpush1.msra.mxu0 0.0
          %538 = vmatprep.subr.mxu0 0.0
          %539 = vmatpush1.msra.mxu0 0.0
          %540 = vmatprep.subr.mxu0 0.0
          %541 = vmatpush1.msra.mxu0 0.0
          %542 = vmatprep.subr.mxu0 0.0
          %543 = vmatpush1.msra.mxu0 0.0
          %544 = vmatprep.subr.mxu0 0.0
          %545 = vmatpush1.msra.mxu0 0.0
          %546 = vmatprep.subr.mxu0 0.0
          %547 = vmatpush1.msra.mxu0 0.0
          %548 = vmatprep.subr.mxu0 0.0
          %549 = vmatpush1.msra.mxu0 0.0
          %550 = vmatprep.subr.mxu0 0.0
          %551 = vmatpush1.msra.mxu0 0.0
          %552 = vmatprep.subr.mxu0 0.0
          %553 = vmatpush1.msra.mxu0 0.0
          %554 = vmatprep.subr.mxu0 0.0
          %555 = vmatpush1.msra.mxu0 0.0
          %556 = vmatprep.subr.mxu0 0.0
          %557 = vmatpush1.msra.mxu0 0.0
          %558 = vmatprep.subr.mxu0 0.0
          %559 = vmatpush1.msra.mxu0 0.0
          %560 = vmatprep.subr.mxu0 0.0
          %561 = vmatpush1.msra.mxu0 0.0
          %562 = vmatprep.subr.mxu0 0.0
          %563 = vmatpush1.msra.mxu0 0.0
          %564 = vmatprep.subr.mxu0 0.0
          %565 = vmatpush1.msra.mxu0 0.0
          %566 = vmatprep.subr.mxu0 0.0
          %567 = vmatpush1.msra.mxu0 0.0
          %568 = vmatprep.subr.mxu0 0.0
          %569 = vmatpush1.msra.mxu0 0.0
          %570 = vmatprep.subr.mxu0 0.0
          %571 = vmatpush1.msra.mxu0 0.0
          %572 = vmatprep.subr.mxu0 0.0
          %573 = vmatpush1.msra.mxu0 0.0
          %574 = vmatprep.subr.mxu0 0.0
          %575 = vmatpush1.msra.mxu0 0.0
          %576 = vmatprep.subr.mxu0 0.0
          %577 = vmatpush1.msra.mxu0 0.0
          %578 = vmatprep.subr.mxu0 0.0
          %579 = vmatpush1.msra.mxu0 0.0
          %580 = vmatprep.subr.mxu0 0.0
          %581 = vmatpush1.msra.mxu0 0.0
          %582 = vmatprep.mubr.f32.mxu0 0.0
          %583 = vmatmul.mubr.f32.gmra.mrb[0].mxu0 %v516
          %v584 = vpop.f32.mrb[0].mxu0
          %v585 = vadd.f32 %v512, %v584
          %v586 = vpop.f32.mrb[0].mxu0
          %587 = vdwg.mxu0
          %v588 = vtanh.pop %v585
          %v589 = vld [vmem:[%s3] sm:$0xff]
          %v590 = vld [vmem:[%s3 + $0x8] sm:$0xff]
          %v591 = vld [vmem:[%s3 + $0x10] sm:$0xff]
          %v592 = vld [vmem:[%s3 + $0x18] sm:$0xff]
          %593 = vrot.lane.b32.xlu0 %v512, 96
          %v594 = vpop.permute.xlu0 %593
          %v597 = vsel %vm514, %v588, 0
          %599 = vmatprep.subr.mxu0 0.0
          %600 = vmatpush1.msra.mxu0 %v589
          %601 = vmatprep.subr.mxu0 0.0
          %602 = vmatpush1.msra.mxu0 %v590
          %603 = vmatprep.subr.mxu0 0.0
          %604 = vmatpush1.msra.mxu0 %v591
          %605 = vmatprep.subr.mxu0 0.0
          %606 = vmatpush1.msra.mxu0 %v592
          %607 = vmatprep.subr.mxu0 0.0
          %608 = vmatpush1.msra.mxu0 0.0
          %609 = vmatprep.subr.mxu0 0.0
          %610 = vmatpush1.msra.mxu0 0.0
          %611 = vmatprep.subr.mxu0 0.0
          %612 = vmatpush1.msra.mxu0 0.0
          %613 = vmatprep.subr.mxu0 0.0
          %614 = vmatpush1.msra.mxu0 0.0
          %615 = vmatprep.subr.mxu0 0.0
          %616 = vmatpush1.msra.mxu0 0.0
          %617 = vmatprep.subr.mxu0 0.0
          %618 = vmatpush1.msra.mxu0 0.0
          %619 = vmatprep.subr.mxu0 0.0
          %620 = vmatpush1.msra.mxu0 0.0
          %621 = vmatprep.subr.mxu0 0.0
          %622 = vmatpush1.msra.mxu0 0.0
          %623 = vmatprep.subr.mxu0 0.0
          %624 = vmatpush1.msra.mxu0 0.0
          %625 = vmatprep.subr.mxu0 0.0
          %626 = vmatpush1.msra.mxu0 0.0
          %627 = vmatprep.subr.mxu0 0.0
          %628 = vmatpush1.msra.mxu0 0.0
          %629 = vmatprep.subr.mxu0 0.0
          %630 = vmatpush1.msra.mxu0 0.0
          %631 = vmatprep.subr.mxu0 0.0
          %632 = vmatpush1.msra.mxu0 0.0
          %633 = vmatprep.subr.mxu0 0.0
          %634 = vmatpush1.msra.mxu0 0.0
          %635 = vmatprep.subr.mxu0 0.0
          %636 = vmatpush1.msra.mxu0 0.0
          %637 = vmatprep.subr.mxu0 0.0
          %638 = vmatpush1.msra.mxu0 0.0
          %639 = vmatprep.subr.mxu0 0.0
          %640 = vmatpush1.msra.mxu0 0.0
          %641 = vmatprep.subr.mxu0 0.0
          %642 = vmatpush1.msra.mxu0 0.0
          %643 = vmatprep.subr.mxu0 0.0
          %644 = vmatpush1.msra.mxu0 0.0
          %645 = vmatprep.subr.mxu0 0.0
          %646 = vmatpush1.msra.mxu0 0.0
          %647 = vmatprep.subr.mxu0 0.0
          %648 = vmatpush1.msra.mxu0 0.0
          %649 = vmatprep.subr.mxu0 0.0
          %650 = vmatpush1.msra.mxu0 0.0
          %651 = vmatprep.subr.mxu0 0.0
          %652 = vmatpush1.msra.mxu0 0.0
          %653 = vmatprep.subr.mxu0 0.0
          %654 = vmatpush1.msra.mxu0 0.0
          %655 = vmatprep.subr.mxu0 0.0
          %656 = vmatpush1.msra.mxu0 0.0
          %657 = vmatprep.subr.mxu0 0.0
          %658 = vmatpush1.msra.mxu0 0.0
          %659 = vmatprep.subr.mxu0 0.0
          %660 = vmatpush1.msra.mxu0 0.0
          %661 = vmatprep.subr.mxu0 0.0
          %662 = vmatpush1.msra.mxu0 0.0
          %663 = vmatprep.mubr.f32.mxu0 0.0
          %664 = vmatmul.mubr.f32.gmra.mrb[0].mxu0 %v597
          %v665 = vpop.f32.mrb[0].mxu0
          %v666 = vadd.f32 %v594, %v665
          %v667 = vpop.f32.mrb[0].mxu0
          %668 = vdwg.mxu0
          %v669 = vtanh.pop %v666
          %670 = vrot.lane.b32.xlu0 %v512, 52
          %v671 = vpop.permute.xlu0 %670
          %v673 = vmul.f32 %v669, %v671
          %vm674 = vcmask 80896
          %v675 = vsel %vm674, %v673, 0.0
          %676 = vadd.xlane.f32.xlu0 %v675
          %v677 = vpop.xlane.xlu0 %676
          %v678 = vadd.f32 %v677, %v512
          %v679 = vmax.f32 %v666, 0.0
          %v680 = vmul.f32 %v679, %v671
          %v681 = vsel %vm674, %v680, 0.0
          %682 = vadd.xlane.f32.xlu0 %v681
          %v683 = vpop.xlane.xlu0 %682
          %v684 = vadd.f32 %v683, %v512
          %686 = vrot.lane.b32.xlu0 %v678, 86
          %v687 = vpop.permute.xlu0 %686
          %690 = vrot.lane.b32.xlu0 %v684, 87
          %v691 = vpop.permute.xlu0 %690
          %vm693 = vcmask 7168
          %v694 = vsel %vm693, %v687, %v691
          %v695 = vld [vmem:[#allocation3] sm:$0x1]
          %v696 = vrcp.pop %v695
          %v697 = vmul.f32 %v695, %v696
          %v698 = vsub.f32 2.0, %v697
          %v699 = vmul.f32 %v696, %v698
          %v700 = vld [vmem:[#allocation2] sm:$0x1]
          %v702 = vlaneseq
          %v703 = vshrl.u32 %v702, 7
          %v704 = vsub.s32 0, %v703
          %v705 = vrot.slane %v700, %v704
          %v707 = vsub.f32 %v694, %v705
          %v708 = vmul.f32 %v707, 1.442695
          %v709 = vpow.pop %v708
          %v711 = vlaneseq
          %v712 = vshrl.u32 %v711, 7
          %v713 = vsub.s32 0, %v712
          %v714 = vrot.slane %v699, %v713
          %v716 = vmul.f32 %v709, %v714
          %718 = vset.pattern.permute.xlu0 0
          %719 = vperm.xlu0 %718, %v716
          %v720 = vpop.permute.xlu0 %719
          %v722 = vmul.f32 %v588, %v720
          %v723 = vld [vmem:[#allocation6] sm:$0xff]
          %v724 = vld [vmem:[#allocation6 + $0x8] sm:$0xff]
          %v725 = vld [vmem:[#allocation6 + $0x10] sm:$0xff]
          %v726 = vld [vmem:[#allocation6 + $0x18] sm:$0xff]
          %727 = vrot.lane.b32.xlu0 %v512, 85
          %v728 = vpop.permute.xlu0 %727
          %v731 = vsel %vm514, %v722, 0
          %733 = vmatprep.subr.mxu0 0.0
          %734 = vmatpush1.msra.mxu0 %v723
          %735 = vmatprep.subr.mxu0 0.0
          %736 = vmatpush1.msra.mxu0 %v724
          %737 = vmatprep.subr.mxu0 0.0
          %738 = vmatpush1.msra.mxu0 %v725
          %739 = vmatprep.subr.mxu0 0.0
          %740 = vmatpush1.msra.mxu0 %v726
          %741 = vmatprep.subr.mxu0 0.0
          %742 = vmatpush1.msra.mxu0 0.0
          %743 = vmatprep.subr.mxu0 0.0
          %744 = vmatpush1.msra.mxu0 0.0
          %745 = vmatprep.subr.mxu0 0.0
          %746 = vmatpush1.msra.mxu0 0.0
          %747 = vmatprep.subr.mxu0 0.0
          %748 = vmatpush1.msra.mxu0 0.0
          %749 = vmatprep.subr.mxu0 0.0
          %750 = vmatpush1.msra.mxu0 0.0
          %751 = vmatprep.subr.mxu0 0.0
          %752 = vmatpush1.msra.mxu0 0.0
          %753 = vmatprep.subr.mxu0 0.0
          %754 = vmatpush1.msra.mxu0 0.0
          %755 = vmatprep.subr.mxu0 0.0
          %756 = vmatpush1.msra.mxu0 0.0
          %757 = vmatprep.subr.mxu0 0.0
          %758 = vmatpush1.msra.mxu0 0.0
          %759 = vmatprep.subr.mxu0 0.0
          %760 = vmatpush1.msra.mxu0 0.0
          %761 = vmatprep.subr.mxu0 0.0
          %762 = vmatpush1.msra.mxu0 0.0
          %763 = vmatprep.subr.mxu0 0.0
          %764 = vmatpush1.msra.mxu0 0.0
          %765 = vmatprep.subr.mxu0 0.0
          %766 = vmatpush1.msra.mxu0 0.0
          %767 = vmatprep.subr.mxu0 0.0
          %768 = vmatpush1.msra.mxu0 0.0
          %769 = vmatprep.subr.mxu0 0.0
          %770 = vmatpush1.msra.mxu0 0.0
          %771 = vmatprep.subr.mxu0 0.0
          %772 = vmatpush1.msra.mxu0 0.0
          %773 = vmatprep.subr.mxu0 0.0
          %774 = vmatpush1.msra.mxu0 0.0
          %775 = vmatprep.subr.mxu0 0.0
          %776 = vmatpush1.msra.mxu0 0.0
          %777 = vmatprep.subr.mxu0 0.0
          %778 = vmatpush1.msra.mxu0 0.0
          %779 = vmatprep.subr.mxu0 0.0
          %780 = vmatpush1.msra.mxu0 0.0
          %781 = vmatprep.subr.mxu0 0.0
          %782 = vmatpush1.msra.mxu0 0.0
          %783 = vmatprep.subr.mxu0 0.0
          %784 = vmatpush1.msra.mxu0 0.0
          %785 = vmatprep.subr.mxu0 0.0
          %786 = vmatpush1.msra.mxu0 0.0
          %787 = vmatprep.subr.mxu0 0.0
          %788 = vmatpush1.msra.mxu0 0.0
          %789 = vmatprep.subr.mxu0 0.0
          %790 = vmatpush1.msra.mxu0 0.0
          %791 = vmatprep.subr.mxu0 0.0
          %792 = vmatpush1.msra.mxu0 0.0
          %793 = vmatprep.subr.mxu0 0.0
          %794 = vmatpush1.msra.mxu0 0.0
          %795 = vmatprep.subr.mxu0 0.0
          %796 = vmatpush1.msra.mxu0 0.0
          %797 = vmatprep.mubr.f32.mxu0 0.0
          %798 = vmatmul.mubr.f32.gmra.mrb[0].mxu0 %v731
          %v799 = vpop.f32.mrb[0].mxu0
          %v800 = vadd.f32 %v728, %v799
          %v801 = vpop.f32.mrb[0].mxu0
          %802 = vdwg.mxu0
          %v803 = vtanh.pop %v800
          %804 = vrot.lane.b32.xlu0 %v512, 42
          %v805 = vpop.permute.xlu0 %804
          %v807 = vmul.f32 %v803, %v805
          %v808 = vsel %vm514, %v807, 0.0
          %809 = vadd.xlane.f32.xlu0 %v808
          %v810 = vpop.xlane.xlu0 %809
          %v811 = vadd.f32 %v810, %v512
          %813 = vrot.lane.b32.xlu0 %v811, 53
          %v814 = vpop.permute.xlu0 %813
          %v816 = vsel %vm693, %v814, %v716
          %vm817 = vcmask 15360
          %818 = vst.msk [vmem:[%s248] sm:$0xff] %vm817, %v816
        $region56: #{tpu_custom_call.1} parent=39 // pred_fallthru
          _
        %p819 = scmp.lt.s32.totalorder %s24, 0
        %s820 = scalar_select %p819, %s24, 0
        %s821 = smul.addr %s820, 8
        %s822 = scalar_lea.vmem %s6, %s821
        // Predicated region
        $region57: #{tpu_custom_call.1} parent=39 // pred_check
          %p823 = pneg %p159
        $region58: #{tpu_custom_call.1} parent=39 // pred_check_branch
          %825 = sbr.rel (%p823) target = $region60
        $region59: #{tpu_custom_call.1} parent=39 // pred_region
          _
        $region60: #{tpu_custom_call.1} parent=39 // pred_fallthru
          _
        // Predicated region
        $region61: #{tpu_custom_call.1} parent=39 // pred_check
          %p826 = pneg %p159
        $region62: #{tpu_custom_call.1} parent=39 // pred_check_branch
          %828 = sbr.rel (%p826) target = $region64
        $region63: #{tpu_custom_call.1} parent=39 // pred_region
          %p829 = scmp.lt.s32.totalorder %s24, 0
          %s830 = scalar_select %p829, %s24, 0
          %s831 = smul.addr %s830, 8
          %s832 = scalar_lea.vmem %s6, %s831
        $region64: #{tpu_custom_call.1} parent=39 // pred_fallthru
          _
      $region40: #{tpu_custom_call.1} parent=5 // pred_fallthru
        _
      %p833 = scmp.le.s32.totalorder 2, %s14
      // Predicated region
      $region65: #{tpu_custom_call.1} parent=5 // pred_check
        %p834 = pneg %p833
      $region66: #{tpu_custom_call.1} parent=5 // pred_check_branch
        %836 = sbr.rel (%p834) target = $region68
      $region67: #{tpu_custom_call.1} parent=5 // pred_region
        %s837 = ssub.s32 %s14, 2
      $region68: #{tpu_custom_call.1} parent=5 // pred_fallthru
        _
    $region6: #{tpu_custom_call.1} parent=1 // loop_footer
      %s18 = sadd.s32 1, %s14
    $region7: #{tpu_custom_call.1} parent=1 // loop_footer_branch
      %13 = sbr.rel target = $region3
    $region8: #{tpu_custom_call.1} parent=1 // loop_exit
      _
    %838 = vsyncpa [#allocation7], 1
    %s839 = scalar_lea.sflag [#allocation7], 1
    %840 = vsyncpa %s839, 1

</llo_original>
